<compile_context>
chip_gen: v7x
topology: tpu7x:2x2x1
jax: 0.10.0
libtpu: 0.0.40
codegen_flags: <defaults>
</compile_context>

<pallas_src>
import functools

import jax
import jax.numpy as jnp
from jax.experimental import pallas as pl
from jax.experimental.pallas import tpu as pltpu


def _round_up(v, m):
    return ((v + m - 1) // m) * m


# ----------------------------- fused MoE kernel ----------------------------- #

def _moe_kernel(x_ref, w1_ref, v1_ref, w2_ref, gate_ref, o_ref,
                eacc_ref, oacc_ref):
    """Grid: (token_tiles, experts, ffn_hidden_tiles) -- last axis fastest.

    Per (t, e, i):
        h1 = x_t @ w1[e, i, :].T        (contract D, no weight transpose)
        h2 = x_t @ v1[e, i, :].T
        eacc += (silu(h1) * h2) @ w2[e, :, i].T   (accumulate over i)
    At i == last:      oacc += gate[t, e] * eacc
    At (e, i) == last: o_t = oacc
    """
    e = pl.program_id(1)
    i = pl.program_id(2)
    n_e = pl.num_programs(1)
    n_i = pl.num_programs(2)

    @pl.when((e == 0) & (i == 0))
    def _():
        oacc_ref[...] = jnp.zeros_like(oacc_ref)

    @pl.when(i == 0)
    def _():
        eacc_ref[...] = jnp.zeros_like(eacc_ref)

    x = x_ref[...]                                        # (TM, D)
    contract_last = (((1,), (1,)), ((), ()))              # contract last dims

    # Gate / up projections: (TM, D) x (TI, D) -> (TM, TI), f32 accumulation.
    h1 = jax.lax.dot_general(x, w1_ref[0], contract_last,
                             preferred_element_type=jnp.float32)
    h2 = jax.lax.dot_general(x, v1_ref[0], contract_last,
                             preferred_element_type=jnp.float32)
    act = (h1 * jax.nn.sigmoid(h1)) * h2                  # SiLU(h1) * h2, f32

    # Down-projection partial: (TM, TI) x (D, TI) -> (TM, D), contract TI.
    eacc_ref[...] += jax.lax.dot_general(act.astype(x.dtype), w2_ref[0],
                                         contract_last,
                                         preferred_element_type=jnp.float32)

    @pl.when(i == n_i - 1)
    def _():
        # Extract this expert's gate column from the (TM, E) tile with an
        # iota mask + lane reduce (robust; avoids dynamic lane slicing).
        gates = gate_ref[...].astype(jnp.float32)                 # (TM, E)
        col = jax.lax.broadcasted_iota(jnp.int32, gates.shape, 1)
        g = jnp.sum(jnp.where(col == e, gates, 0.0),
                    axis=1, keepdims=True)                        # (TM, 1)
        oacc_ref[...] += eacc_ref[...] * g

        @pl.when(e == n_e - 1)
        def _():
            o_ref[...] = oacc_ref[...].astype(o_ref.dtype)


def fused_moe(x, w1, v1, w2, gates, *, tm=None, ti=None):
    """x: (T, D); w1/v1: (E, I, D); w2: (E, D, I); gates: (T, E) dense top-k weights."""
    T, D = x.shape
    E, I, _ = w1.shape

    # ---- tile selection (multiples of the (8, 128) vreg tile) -------------- #
    if tm is None:
        tm = 256 if T >= 256 else _round_up(T, 8)
    tm = max(8, _round_up(tm, 8))
    if ti is None:
        ti = I
        for cand in (512, 384, 256, 128):
            if I % cand == 0:
                ti = cand
                break
    assert I % ti == 0, f"ffn_hidden_size {I} not divisible by TI {ti}"

    # Pad tokens to a multiple of the token tile (padded rows have zero gates).
    T_pad = _round_up(T, tm)
    if T_pad != T:
        x = jnp.pad(x, ((0, T_pad - T), (0, 0)))
        gates = jnp.pad(gates, ((0, T_pad - T), (0, 0)))
    gates = gates.astype(jnp.float32)

    grid = (T_pad // tm, E, I // ti)

    # Explicit VMEM budget: double-buffered input/output blocks + f32 scratch.
    itemsize = jnp.dtype(x.dtype).itemsize
    vmem_bytes = (
        2 * tm * D * itemsize            # x
        + 2 * 2 * ti * D * itemsize      # w1 + v1
        + 2 * D * ti * itemsize          # w2
        + 2 * tm * E * 4                 # gates (f32)
        + 2 * tm * D * itemsize          # output
        + 2 * tm * D * 4                 # two f32 accumulators
    )
    # Cap well under v7x's 64 MiB physical VMEM so the same code runs on all gens.
    vmem_limit = int(min(max(vmem_bytes + (8 << 20), 32 << 20), 48 << 20))

    out = pl.pallas_call(
        _moe_kernel,
        out_shape=jax.ShapeDtypeStruct((T_pad, D), x.dtype),
        grid_spec=pltpu.PrefetchScalarGridSpec(
            num_scalar_prefetch=0,
            grid=grid,
            in_specs=[
                pl.BlockSpec((tm, D), lambda t, e, i: (t, 0)),        # x (deduped DMA)
                pl.BlockSpec((1, ti, D), lambda t, e, i: (e, i, 0)),  # w1
                pl.BlockSpec((1, ti, D), lambda t, e, i: (e, i, 0)),  # v1
                pl.BlockSpec((1, D, ti), lambda t, e, i: (e, 0, i)),  # w2
                pl.BlockSpec((tm, E), lambda t, e, i: (t, 0)),        # gates (deduped)
            ],
            out_specs=pl.BlockSpec((tm, D), lambda t, e, i: (t, 0)),
            scratch_shapes=[pltpu.VMEM((tm, D), jnp.float32),   # per-expert partial
                            pltpu.VMEM((tm, D), jnp.float32)]), # final accumulator
        compiler_params=pltpu.CompilerParams(
            # Token tiles are independent -> shard across the 2 TCs on v7x.
            dimension_semantics=("parallel", "arbitrary", "arbitrary"),
            vmem_limit_bytes=vmem_limit),
    )(x, w1, v1, w2, gates)

    return out[:T] if T_pad != T else out


# ------------------------------ Module wrapper ------------------------------ #

@functools.partial(jax.jit, static_argnames=("top_k", "tm", "ti"))
def dbrx_moe_forward(hidden_states, w_router, w1, v1, w2, *, top_k,
                     tm=None, ti=None):
    orig_shape = hidden_states.shape
    d_model = orig_shape[-1]
    x = hidden_states.reshape(-1, d_model)                          # (T, D)

    # Router (ReplicatedLinear, bias=False): plain XLA matmul -- E is far below
    # the 128-lane width, so a Pallas router would be lane-sparse and slower.
    logits = jnp.dot(x.astype(jnp.float32), w_router.astype(jnp.float32))

    # vLLM fused_topk semantics: softmax -> top-k -> renormalize.
    probs = jax.nn.softmax(logits, axis=-1)
    topk_w, topk_ids = jax.lax.top_k(probs, top_k)
    topk_w = topk_w / jnp.sum(topk_w, axis=-1, keepdims=True)

    T, E = probs.shape
    gates = jnp.zeros((T, E), jnp.float32).at[
        jnp.arange(T)[:, None], topk_ids].set(topk_w)               # dense routing weights

    # TODO(synk): replace the dense expert sweep with grouped (sorted-by-expert)
    # routing via PrefetchScalarGridSpec scalar prefetch of group offsets to skip
    # the ~E/top_k x redundant MXU work at production DBRX sizes.
    out = fused_moe(x, w1, v1, w2, gates, tm=tm, ti=ti)             # (T, D)
    return out.reshape(orig_shape)


# ------------------------------- pure-JAX ref -------------------------------- #

def reference_moe(hidden_states, w_router, w1, v1, w2, top_k):
    d_model = hidden_states.shape[-1]
    x = hidden_states.reshape(-1, d_model).astype(jnp.float32)
    logits = x @ w_router.astype(jnp.float32)
    probs = jax.nn.softmax(logits, axis=-1)
    topk_w, topk_ids = jax.lax.top_k(probs, top_k)
    topk_w = topk_w / jnp.sum(topk_w, axis=-1, keepdims=True)
    T, E = probs.shape
    gates = jnp.zeros((T, E), jnp.float32).at[
        jnp.arange(T)[:, None], topk_ids].set(topk_w)
    h1 = jnp.einsum('td,eid->tei', x, w1.astype(jnp.float32))
    h2 = jnp.einsum('td,eid->tei', x, v1.astype(jnp.float32))
    act = (h1 * jax.nn.sigmoid(h1)) * h2
    per_e = jnp.einsum('tei,edi->ted', act, w2.astype(jnp.float32))
    out = jnp.einsum('te,ted->td', gates, per_e)
    return out.reshape(hidden_states.shape)


# ---------------------------------- main ------------------------------------ #

if __name__ == "__main__":
    # Small DbrxConfig-like hyperparameters
    batch, seq = 2, 8
    d_model = 128                 # config.d_model
    ffn_hidden = 256              # config.ffn_config.ffn_hidden_size
    num_experts = 8               # config.ffn_config.moe_num_experts
    top_k = 2                     # config.ffn_config.moe_top_k
    dtype = jnp.float32           # torch.get_default_dtype()

    key = jax.random.PRNGKey(0)
    k_x, k_r, k_w1, k_v1, k_w2 = jax.random.split(key, 5)

    hidden_states = jax.random.normal(k_x, (batch, seq, d_model), dtype)
    w_router = (jax.random.normal(k_r, (d_model, num_experts), jnp.float32) * 0.05
                ).astype(dtype)
    w1 = (jax.random.normal(k_w1, (num_experts, ffn_hidden, d_model), jnp.float32)
          * 0.05).astype(dtype)
    v1 = (jax.random.normal(k_v1, (num_experts, ffn_hidden, d_model), jnp.float32)
          * 0.05).astype(dtype)
    w2 = (jax.random.normal(k_w2, (num_experts, d_model, ffn_hidden), jnp.float32)
          * 0.05).astype(dtype)

    # tm=8 / ti=128 exercises all three grid axes at toy size:
    # 2 token tiles x 8 experts x 2 ffn-hidden reduction tiles.
    out = dbrx_moe_forward(hidden_states, w_router, w1, v1, w2,
                           top_k=top_k, tm=8, ti=128)
    out = jax.block_until_ready(out)

    ref = reference_moe(hidden_states, w_router, w1, v1, w2, top_k)
    assert out.shape == hidden_states.shape
    assert jnp.allclose(out.astype(jnp.float32), ref, rtol=1e-2, atol=1e-2), (
        "mismatch vs reference")

    print("KERNEL_OK")
</pallas_src>

<mosaic_0001>
module attributes {stable_mosaic.version = 11 : i64} {
  func.func @_moe_kernel(%arg0: i32, %arg1: i32, %arg2: i32, %arg3: memref<8x128xf32, #tpu.memory_space<vmem>>, %arg4: memref<1x128x128xf32, #tpu.memory_space<vmem>>, %arg5: memref<1x128x128xf32, #tpu.memory_space<vmem>>, %arg6: memref<1x128x128xf32, #tpu.memory_space<vmem>>, %arg7: memref<8x8xf32, #tpu.memory_space<vmem>>, %arg8: memref<8x128xf32, #tpu.memory_space<vmem>>, %arg9: memref<8x128xf32, #tpu.memory_space<vmem>>, %arg10: memref<8x128xf32, #tpu.memory_space<vmem>>) attributes {dimension_semantics = [#tpu.dimension_semantics<parallel>, #tpu.dimension_semantics<arbitrary>, #tpu.dimension_semantics<arbitrary>], iteration_bounds = array<i64: 2, 8, 2>, scalar_prefetch = 0 : i64, scratch_operands = 2 : i64, tpu.core_type = #tpu.core_type<tc>, window_params = [{transform_indices = @transform_0, window_bounds = array<i64: 8, 128>}, {transform_indices = @transform_1, window_bounds = array<i64: 1, 128, 128>}, {transform_indices = @transform_2, window_bounds = array<i64: 1, 128, 128>}, {transform_indices = @transform_3, window_bounds = array<i64: 1, 128, 128>}, {transform_indices = @transform_4, window_bounds = array<i64: 8, 8>}, {transform_indices = @transform_5, window_bounds = array<i64: 8, 128>}]} {
    %c0_i32 = arith.constant 0 : i32
    %0 = arith.cmpi eq, %arg1, %c0_i32 : i32
    %c0_i32_0 = arith.constant 0 : i32
    %1 = arith.cmpi eq, %arg2, %c0_i32_0 : i32
    %2 = arith.andi %0, %1 : i1
    %3 = arith.extui %2 : i1 to i32
    %c0_i32_1 = arith.constant 0 : i32
    %4 = arith.cmpi ne, %3, %c0_i32_1 : i32
    scf.if %4 {
      %cst_22 = arith.constant 0.000000e+00 : f32
      %31 = vector.broadcast %cst_22 : f32 to vector<8x128xf32>
      %c0_23 = arith.constant 0 : index
      %c0_24 = arith.constant 0 : index
      %32 = vector.load %arg10[%c0_23, %c0_24] : memref<8x128xf32, #tpu.memory_space<vmem>>, vector<8x128xf32>
      tpu.vector_store %arg10[%c0_23, %c0_24], %31 {strides = array<i32>} : memref<8x128xf32, #tpu.memory_space<vmem>>, vector<8x128xf32>,
    } else {
    }
    %c0_i32_2 = arith.constant 0 : i32
    %5 = arith.cmpi eq, %arg2, %c0_i32_2 : i32
    %6 = arith.extui %5 : i1 to i32
    %c0_i32_3 = arith.constant 0 : i32
    %7 = arith.cmpi ne, %6, %c0_i32_3 : i32
    scf.if %7 {
      %cst_22 = arith.constant 0.000000e+00 : f32
      %31 = vector.broadcast %cst_22 : f32 to vector<8x128xf32>
      %c0_23 = arith.constant 0 : index
      %c0_24 = arith.constant 0 : index
      %32 = vector.load %arg9[%c0_23, %c0_24] : memref<8x128xf32, #tpu.memory_space<vmem>>, vector<8x128xf32>
      tpu.vector_store %arg9[%c0_23, %c0_24], %31 {strides = array<i32>} : memref<8x128xf32, #tpu.memory_space<vmem>>, vector<8x128xf32>,
    } else {
    }
    %c0 = arith.constant 0 : index
    %c0_4 = arith.constant 0 : index
    %8 = vector.load %arg3[%c0, %c0_4] : memref<8x128xf32, #tpu.memory_space<vmem>>, vector<8x128xf32>
    %c0_5 = arith.constant 0 : index
    %c0_6 = arith.constant 0 : index
    %c0_7 = arith.constant 0 : index
    %9 = vector.load %arg4[%c0_5, %c0_6, %c0_7] : memref<1x128x128xf32, #tpu.memory_space<vmem>>, vector<1x128x128xf32>
    %10 = vector.shape_cast %9 : vector<1x128x128xf32> to vector<128x128xf32>
    %cst = arith.constant dense<0.000000e+00> : vector<8x128xf32>
    %11 = tpu.matmul %8, %10, %cst {dimension_numbers = #tpu.dot_dimension_numbers<[1], [1], [0], [0], [0, 0, 1, 0], [], []>} : vector<8x128xf32>, vector<128x128xf32>, vector<8x128xf32> -> vector<8x128xf32>
    %c0_8 = arith.constant 0 : index
    %c0_9 = arith.constant 0 : index
    %c0_10 = arith.constant 0 : index
    %12 = vector.load %arg5[%c0_8, %c0_9, %c0_10] : memref<1x128x128xf32, #tpu.memory_space<vmem>>, vector<1x128x128xf32>
    %13 = vector.shape_cast %12 : vector<1x128x128xf32> to vector<128x128xf32>
    %cst_11 = arith.constant dense<0.000000e+00> : vector<8x128xf32>
    %14 = tpu.matmul %8, %13, %cst_11 {dimension_numbers = #tpu.dot_dimension_numbers<[1], [1], [0], [0], [0, 0, 1, 0], [], []>} : vector<8x128xf32>, vector<128x128xf32>, vector<8x128xf32> -> vector<8x128xf32>
    %15 = arith.negf %11 : vector<8x128xf32>
    %16 = math.exp %15 : vector<8x128xf32>
    %cst_12 = arith.constant 1.000000e+00 : f32
    %17 = vector.broadcast %cst_12 : f32 to vector<8x128xf32>
    %18 = arith.addf %17, %16 : vector<8x128xf32>
    %19 = arith.divf %17, %18 : vector<8x128xf32>
    %20 = arith.mulf %11, %19 : vector<8x128xf32>
    %21 = arith.mulf %20, %14 : vector<8x128xf32>
    %c0_13 = arith.constant 0 : index
    %c0_14 = arith.constant 0 : index
    %22 = vector.load %arg9[%c0_13, %c0_14] : memref<8x128xf32, #tpu.memory_space<vmem>>, vector<8x128xf32>
    %c0_15 = arith.constant 0 : index
    %c0_16 = arith.constant 0 : index
    %c0_17 = arith.constant 0 : index
    %23 = vector.load %arg6[%c0_15, %c0_16, %c0_17] : memref<1x128x128xf32, #tpu.memory_space<vmem>>, vector<1x128x128xf32>
    %24 = vector.shape_cast %23 : vector<1x128x128xf32> to vector<128x128xf32>
    %cst_18 = arith.constant dense<0.000000e+00> : vector<8x128xf32>
    %25 = tpu.matmul %21, %24, %cst_18 {dimension_numbers = #tpu.dot_dimension_numbers<[1], [1], [0], [0], [0, 0, 1, 0], [], []>} : vector<8x128xf32>, vector<128x128xf32>, vector<8x128xf32> -> vector<8x128xf32>
    %26 = arith.addf %22, %25 : vector<8x128xf32>
    %c0_19 = arith.constant 0 : index
    %c0_20 = arith.constant 0 : index
    %27 = vector.load %arg9[%c0_19, %c0_20] : memref<8x128xf32, #tpu.memory_space<vmem>>, vector<8x128xf32>
    tpu.vector_store %arg9[%c0_19, %c0_20], %26 {strides = array<i32>} : memref<8x128xf32, #tpu.memory_space<vmem>>, vector<8x128xf32>,
    %c1_i32 = arith.constant 1 : i32
    %28 = arith.cmpi eq, %arg2, %c1_i32 : i32
    %29 = arith.extui %28 : i1 to i32
    %c0_i32_21 = arith.constant 0 : i32
    %30 = arith.cmpi ne, %29, %c0_i32_21 : i32
    scf.if %30 {
      %c0_22 = arith.constant 0 : index
      %c0_23 = arith.constant 0 : index
      %31 = vector.load %arg7[%c0_22, %c0_23] : memref<8x8xf32, #tpu.memory_space<vmem>>, vector<8x8xf32>
      %32 = tpu.iota {dimensions = array<i32: 1>} : vector<8x8xi32>
      %33 = vector.broadcast %arg1 : i32 to vector<8x8xi32>
      %34 = arith.cmpi eq, %32, %33 : vector<8x8xi32>
      %cst_24 = arith.constant 0.000000e+00 : f32
      %35 = vector.broadcast %cst_24 : f32 to vector<8x8xf32>
      %36 = arith.select %34, %31, %35 : vector<8x8xi1>, vector<8x8xf32>
      %cst_25 = arith.constant dense<0.000000e+00> : vector<8xf32>
      %37 = vector.multi_reduction <add>, %36, %cst_25 [1] : vector<8x8xf32> to vector<8xf32>
      %38 = vector.shape_cast %37 : vector<8xf32> to vector<8x1xf32>
      %c0_26 = arith.constant 0 : index
      %c0_27 = arith.constant 0 : index
      %39 = vector.load %arg10[%c0_26, %c0_27] : memref<8x128xf32, #tpu.memory_space<vmem>>, vector<8x128xf32>
      %c0_28 = arith.constant 0 : index
      %c0_29 = arith.constant 0 : index
      %40 = vector.load %arg9[%c0_28, %c0_29] : memref<8x128xf32, #tpu.memory_space<vmem>>, vector<8x128xf32>
      %41 = vector.broadcast %38 : vector<8x1xf32> to vector<8x128xf32>
      %42 = arith.mulf %40, %41 : vector<8x128xf32>
      %43 = arith.addf %39, %42 : vector<8x128xf32>
      %c0_30 = arith.constant 0 : index
      %c0_31 = arith.constant 0 : index
      %44 = vector.load %arg10[%c0_30, %c0_31] : memref<8x128xf32, #tpu.memory_space<vmem>>, vector<8x128xf32>
      tpu.vector_store %arg10[%c0_30, %c0_31], %43 {strides = array<i32>} : memref<8x128xf32, #tpu.memory_space<vmem>>, vector<8x128xf32>,
      %c7_i32 = arith.constant 7 : i32
      %45 = arith.cmpi eq, %arg1, %c7_i32 : i32
      %46 = arith.extui %45 : i1 to i32
      %c0_i32_32 = arith.constant 0 : i32
      %47 = arith.cmpi ne, %46, %c0_i32_32 : i32
      scf.if %47 {
        %c0_33 = arith.constant 0 : index
        %c0_34 = arith.constant 0 : index
        %48 = vector.load %arg10[%c0_33, %c0_34] : memref<8x128xf32, #tpu.memory_space<vmem>>, vector<8x128xf32>
        %c0_35 = arith.constant 0 : index
        %c0_36 = arith.constant 0 : index
        %49 = vector.load %arg8[%c0_35, %c0_36] : memref<8x128xf32, #tpu.memory_space<vmem>>, vector<8x128xf32>
        tpu.vector_store %arg8[%c0_35, %c0_36], %48 {strides = array<i32>} : memref<8x128xf32, #tpu.memory_space<vmem>>, vector<8x128xf32>,
      } else {
      }
    } else {
    }
    return
  }
  func.func @transform_0(%arg0: i32, %arg1: i32, %arg2: i32) -> (i32, i32) {
    %c0_i32 = arith.constant 0 : i32
    %c0_i32_0 = arith.constant 0 : i32
    return %arg0, %c0_i32 : i32, i32
  }
  func.func @transform_1(%arg0: i32, %arg1: i32, %arg2: i32) -> (i32, i32, i32) {
    %c0_i32 = arith.constant 0 : i32
    %c0_i32_0 = arith.constant 0 : i32
    return %arg1, %arg2, %c0_i32 : i32, i32, i32
  }
  func.func @transform_2(%arg0: i32, %arg1: i32, %arg2: i32) -> (i32, i32, i32) {
    %c0_i32 = arith.constant 0 : i32
    %c0_i32_0 = arith.constant 0 : i32
    return %arg1, %arg2, %c0_i32 : i32, i32, i32
  }
  func.func @transform_3(%arg0: i32, %arg1: i32, %arg2: i32) -> (i32, i32, i32) {
    %c0_i32 = arith.constant 0 : i32
    %c0_i32_0 = arith.constant 0 : i32
    return %arg1, %c0_i32, %arg2 : i32, i32, i32
  }
  func.func @transform_4(%arg0: i32, %arg1: i32, %arg2: i32) -> (i32, i32) {
    %c0_i32 = arith.constant 0 : i32
    %c0_i32_0 = arith.constant 0 : i32
    return %arg0, %c0_i32 : i32, i32
  }
  func.func @transform_5(%arg0: i32, %arg1: i32, %arg2: i32) -> (i32, i32) {
    %c0_i32 = arith.constant 0 : i32
    %c0_i32_0 = arith.constant 0 : i32
    return %arg0, %c0_i32 : i32, i32
  }
}

</mosaic_0001>

<llo_original>
// kernel: dbrx_moe_forward.1
$region0: #{dbrx_moe_forward.1}
  #allocation0 [shape = 'u32[]', space=smem, size = 0x4, offset = 0x4, fixed_abs, tag = 'smem constant byte address 0x4 - core index']
  #allocation1 [shape = 'u32[144,128]{1,0:T(1,128)}', space=vmem, size = 0x12000, scoped, tag = 'internal scratch']
  #allocation2 [shape = 'f32[8,128]{1,0:T(8,128)}', space=vmem, size = 0x1000, scoped, tag = 'scratch operand']
  #allocation3 [shape = 'f32[8,128]{1,0:T(8,128)}', space=vmem, size = 0x1000, scoped, tag = 'scratch operand']
  %s0 = inlined_call_operand.vmem [shape: f32[16,128], index: 0, kind: input, shape index: {}]
  %s1 = inlined_call_operand.vmem [shape: f32[8,256,128], index: 1, kind: input, shape index: {}]
  %s2 = inlined_call_operand.vmem [shape: f32[8,256,128], index: 2, kind: input, shape index: {}]
  %s3 = inlined_call_operand.vmem [shape: f32[8,128,256], index: 3, kind: input, shape index: {}]
  %s4 = inlined_call_operand.vmem [shape: f32[16,8], index: 4, kind: input, shape index: {}]
  %s5 = inlined_call_operand.hbm [shape: f32[16,128], index: 5, kind: output, shape index: {}]
  %s6 = sld [smem:[#allocation0]]
  $region107: #{dbrx_moe_forward.1} parent=0
    _
  %s8 = ssub.s32 1, %s6
  %s9 = scalar_select 0, %s8, %s6
  $region1: #{dbrx_moe_forward.1} parent=0
    #allocation4 [shape = 'u8[131072]{0}', space=vmem, size = 0x20000, scoped, tag = 'input window, operand 3']
    #allocation5 [shape = 'u8[8192]{0}', space=vmem, size = 0x2000, scoped, tag = 'output window, operand 0']
    #allocation6 [shape = 's32[2]{0}', space=sflag, size = 0x8, scoped, tag = 'scoped memory for dbrx_moe_forward.1']
    %10 = vsyncpa [#allocation6], 0
    %s11 = scalar_lea.sflag [#allocation6], 1
    %12 = vsyncpa %s11, 0
    loop: start=0, step=1, limit=34
    $region2: #{dbrx_moe_forward.1} parent=1 // loop_pre_header
      _
    $region3: #{dbrx_moe_forward.1} parent=1 // loop_header
      %s14 = sphi 0, %s18
      %p15 = scmp.ge.s32.totalorder %s14, 34
      %s21 = sphi 0, %s40
      %s22 = sphi 0, %s36
      %s23 = sphi 0, %s32
      %s24 = sphi 0, %s21
      %s25 = sphi 0, %s22
      %s26 = sphi 0, %s23
      %s27 = sphi 0, %s24
      %s28 = sphi 0, %s25
      %s29 = sphi 0, %s26
      %s43 = sphi 0, %s45
      %s46 = sphi 0, %s43
      %s47 = sphi 0, %s46
      %s63 = sphi 0, %s47
      %s71 = sphi 0, %s73
      %s74 = sphi 0, %s71
      %s75 = sphi 0, %s74
      %s91 = sphi 0, %s75
      %s99 = sphi 0, %s101
      %s102 = sphi 0, %s99
      %s103 = sphi 0, %s102
      %s119 = sphi 0, %s103
      %s127 = sphi 0, %s129
      %s130 = sphi 0, %s127
      %s131 = sphi 0, %s130
      %s147 = sphi 0, %s131
      %s153 = sphi 0, %s155
      %s156 = sphi 0, %s153
      %s157 = sphi 0, %s156
      %s173 = sphi 0, %s157
      %s179 = sphi 0, %s181
      %s182 = sphi 0, %s179
      %s183 = sphi 0, %s182
      %s199 = sphi 0, %s183
    $region4: #{dbrx_moe_forward.1} parent=1 // loop_header_branch
      %17 = sbr.rel (%p15) target = $region8
    $region5: #{dbrx_moe_forward.1} parent=1 // loop_body
      %s19 = ssub.s32 %s14, 1
      %s20 = ssub.s32 %s14, 2
      %s30 = sadd.s32 1, %s23
      %p31 = scmp.ge.s32.totalorder %s30, 2
      %s32 = scalar_select %p31, 0, %s30
      %s33 = sadd.s32 1, %s22
      %s34 = scalar_select %p31, %s33, %s22
      %p35 = scmp.ge.s32.totalorder %s34, 8
      %s36 = scalar_select %p35, 0, %s34
      %s37 = sadd.s32 1, %s21
      %s38 = scalar_select %p35, %s37, %s21
      %p39 = scmp.ge.s32.totalorder %s38, 2
      %s40 = scalar_select %p39, 0, %s38
      %s41 = ssub.s32 %s21, %s40
      %p42 = scmp.eq.s32.totalorder %s41, 0
      %s44 = sadd.s32 %s43, 1
      %s45 = scalar_select %p42, %s43, %s44
      %p48 = pneg %p42
      %p49 = scmp.eq.s32.totalorder %s14, 31
      %p50 = por %p48, %p49
      %p51 = scmp.ne.s32.totalorder %s43, %s46
      %p52 = scmp.eq.s32.totalorder %s14, 0
      %p53 = por %p51, %p52
      %p54 = scmp.ne.s32.totalorder %s43, %s46
      %p55 = scmp.eq.s32.totalorder %s19, 31
      %p56 = por %p54, %p55
      %p57 = scmp.ne.s32.totalorder %s46, %s47
      %p58 = scmp.eq.s32.totalorder %s19, 0
      %p59 = por %p57, %p58
      %p60 = scmp.ne.s32.totalorder %s46, %s47
      %p61 = scmp.eq.s32.totalorder %s20, 31
      %p62 = por %p60, %p61
      %p64 = scmp.ne.s32.totalorder %s47, %s63
      %p65 = scmp.eq.s32.totalorder %s20, 0
      %p66 = por %p64, %p65
      %s67 = ssub.s32 %s22, %s36
      %s68 = ssub.s32 %s23, %s32
      %s69 = sor.u32 %s67, %s68
      %p70 = scmp.eq.s32.totalorder %s69, 0
      %s72 = sadd.s32 %s71, 1
      %s73 = scalar_select %p70, %s71, %s72
      %p76 = pneg %p70
      %p77 = scmp.eq.s32.totalorder %s14, 31
      %p78 = por %p76, %p77
      %p79 = scmp.ne.s32.totalorder %s71, %s74
      %p80 = scmp.eq.s32.totalorder %s14, 0
      %p81 = por %p79, %p80
      %p82 = scmp.ne.s32.totalorder %s71, %s74
      %p83 = scmp.eq.s32.totalorder %s19, 31
      %p84 = por %p82, %p83
      %p85 = scmp.ne.s32.totalorder %s74, %s75
      %p86 = scmp.eq.s32.totalorder %s19, 0
      %p87 = por %p85, %p86
      %p88 = scmp.ne.s32.totalorder %s74, %s75
      %p89 = scmp.eq.s32.totalorder %s20, 31
      %p90 = por %p88, %p89
      %p92 = scmp.ne.s32.totalorder %s75, %s91
      %p93 = scmp.eq.s32.totalorder %s20, 0
      %p94 = por %p92, %p93
      %s95 = ssub.s32 %s22, %s36
      %s96 = ssub.s32 %s23, %s32
      %s97 = sor.u32 %s95, %s96
      %p98 = scmp.eq.s32.totalorder %s97, 0
      %s100 = sadd.s32 %s99, 1
      %s101 = scalar_select %p98, %s99, %s100
      %p104 = pneg %p98
      %p105 = scmp.eq.s32.totalorder %s14, 31
      %p106 = por %p104, %p105
      %p107 = scmp.ne.s32.totalorder %s99, %s102
      %p108 = scmp.eq.s32.totalorder %s14, 0
      %p109 = por %p107, %p108
      %p110 = scmp.ne.s32.totalorder %s99, %s102
      %p111 = scmp.eq.s32.totalorder %s19, 31
      %p112 = por %p110, %p111
      %p113 = scmp.ne.s32.totalorder %s102, %s103
      %p114 = scmp.eq.s32.totalorder %s19, 0
      %p115 = por %p113, %p114
      %p116 = scmp.ne.s32.totalorder %s102, %s103
      %p117 = scmp.eq.s32.totalorder %s20, 31
      %p118 = por %p116, %p117
      %p120 = scmp.ne.s32.totalorder %s103, %s119
      %p121 = scmp.eq.s32.totalorder %s20, 0
      %p122 = por %p120, %p121
      %s123 = ssub.s32 %s22, %s36
      %s124 = ssub.s32 %s23, %s32
      %s125 = sor.u32 %s123, %s124
      %p126 = scmp.eq.s32.totalorder %s125, 0
      %s128 = sadd.s32 %s127, 1
      %s129 = scalar_select %p126, %s127, %s128
      %p132 = pneg %p126
      %p133 = scmp.eq.s32.totalorder %s14, 31
      %p134 = por %p132, %p133
      %p135 = scmp.ne.s32.totalorder %s127, %s130
      %p136 = scmp.eq.s32.totalorder %s14, 0
      %p137 = por %p135, %p136
      %p138 = scmp.ne.s32.totalorder %s127, %s130
      %p139 = scmp.eq.s32.totalorder %s19, 31
      %p140 = por %p138, %p139
      %p141 = scmp.ne.s32.totalorder %s130, %s131
      %p142 = scmp.eq.s32.totalorder %s19, 0
      %p143 = por %p141, %p142
      %p144 = scmp.ne.s32.totalorder %s130, %s131
      %p145 = scmp.eq.s32.totalorder %s20, 31
      %p146 = por %p144, %p145
      %p148 = scmp.ne.s32.totalorder %s131, %s147
      %p149 = scmp.eq.s32.totalorder %s20, 0
      %p150 = por %p148, %p149
      %s151 = ssub.s32 %s21, %s40
      %p152 = scmp.eq.s32.totalorder %s151, 0
      %s154 = sadd.s32 %s153, 1
      %s155 = scalar_select %p152, %s153, %s154
      %p158 = pneg %p152
      %p159 = scmp.eq.s32.totalorder %s14, 31
      %p160 = por %p158, %p159
      %p161 = scmp.ne.s32.totalorder %s153, %s156
      %p162 = scmp.eq.s32.totalorder %s14, 0
      %p163 = por %p161, %p162
      %p164 = scmp.ne.s32.totalorder %s153, %s156
      %p165 = scmp.eq.s32.totalorder %s19, 31
      %p166 = por %p164, %p165
      %p167 = scmp.ne.s32.totalorder %s156, %s157
      %p168 = scmp.eq.s32.totalorder %s19, 0
      %p169 = por %p167, %p168
      %p170 = scmp.ne.s32.totalorder %s156, %s157
      %p171 = scmp.eq.s32.totalorder %s20, 31
      %p172 = por %p170, %p171
      %p174 = scmp.ne.s32.totalorder %s157, %s173
      %p175 = scmp.eq.s32.totalorder %s20, 0
      %p176 = por %p174, %p175
      %s177 = ssub.s32 %s21, %s40
      %p178 = scmp.eq.s32.totalorder %s177, 0
      %s180 = sadd.s32 %s179, 1
      %s181 = scalar_select %p178, %s179, %s180
      %p184 = pneg %p178
      %p185 = scmp.eq.s32.totalorder %s14, 31
      %p186 = por %p184, %p185
      %p187 = scmp.ne.s32.totalorder %s179, %s182
      %p188 = scmp.eq.s32.totalorder %s14, 0
      %p189 = por %p187, %p188
      %p190 = scmp.ne.s32.totalorder %s179, %s182
      %p191 = scmp.eq.s32.totalorder %s19, 31
      %p192 = por %p190, %p191
      %p193 = scmp.ne.s32.totalorder %s182, %s183
      %p194 = scmp.eq.s32.totalorder %s19, 0
      %p195 = por %p193, %p194
      %p196 = scmp.ne.s32.totalorder %s182, %s183
      %p197 = scmp.eq.s32.totalorder %s20, 31
      %p198 = por %p196, %p197
      %p200 = scmp.ne.s32.totalorder %s183, %s199
      %p201 = scmp.eq.s32.totalorder %s20, 0
      %p202 = por %p200, %p201
      %p203 = scmp.le.s32.totalorder 1, %s14
      %p204 = scmp.lt.s32.totalorder %s14, 33
      %p205 = pnand %p203, %p204
      %p206 = pneg %p205
      // Predicated region
      $region9: #{dbrx_moe_forward.1} parent=5 // pred_check
        _
      $region10: #{dbrx_moe_forward.1} parent=5 // pred_check_branch
        %208 = sbr.rel (%p205) target = $region12
      $region11: #{dbrx_moe_forward.1} parent=5 // pred_region
        %s209 = ssub.s32 %s14, 1
      $region12: #{dbrx_moe_forward.1} parent=5 // pred_fallthru
        _
      %p210 = scmp.lt.s32.totalorder %s14, 32
      // Predicated region
      $region13: #{dbrx_moe_forward.1} parent=5 // pred_check
        %p211 = pneg %p210
      $region14: #{dbrx_moe_forward.1} parent=5 // pred_check_branch
        %213 = sbr.rel (%p211) target = $region16
      $region15: #{dbrx_moe_forward.1} parent=5 // pred_region
        // Predicated region
        $region17: #{dbrx_moe_forward.1} parent=15 // pred_check
          %p214 = pneg %p53
        $region18: #{dbrx_moe_forward.1} parent=15 // pred_check_branch
          %216 = sbr.rel (%p214) target = $region20
        $region19: #{dbrx_moe_forward.1} parent=15 // pred_region
          %p217 = scmp.lt.s32.totalorder %s21, 1
          %s218 = scalar_select %p217, %s21, 1
          %s219 = smul.addr %s218, 8
          %s220 = scalar_lea.vmem %s0, %s219
        $region20: #{dbrx_moe_forward.1} parent=15 // pred_fallthru
          _
        // Predicated region
        $region21: #{dbrx_moe_forward.1} parent=15 // pred_check
          %p221 = pneg %p81
        $region22: #{dbrx_moe_forward.1} parent=15 // pred_check_branch
          %223 = sbr.rel (%p221) target = $region24
        $region23: #{dbrx_moe_forward.1} parent=15 // pred_region
          %s224 = smul.u32 16, %s23
          %p225 = scmp.lt.s32.totalorder %s22, 7
          %s226 = scalar_select %p225, %s22, 7
          %p227 = scmp.lt.s32.totalorder %s224, 31
          %s228 = scalar_select %p227, %s224, 31
          %s229 = smul.addr %s226, 32
          %s230 = sadd.s32 %s228, %s229
          %s231 = smul.addr %s230, 8
          %s232 = scalar_lea.vmem %s1, %s231
          %s233 = smul.u32 16, %s23
        $region24: #{dbrx_moe_forward.1} parent=15 // pred_fallthru
          _
        // Predicated region
        $region25: #{dbrx_moe_forward.1} parent=15 // pred_check
          %p234 = pneg %p109
        $region26: #{dbrx_moe_forward.1} parent=15 // pred_check_branch
          %236 = sbr.rel (%p234) target = $region28
        $region27: #{dbrx_moe_forward.1} parent=15 // pred_region
          %s237 = smul.u32 16, %s23
          %p238 = scmp.lt.s32.totalorder %s22, 7
          %s239 = scalar_select %p238, %s22, 7
          %p240 = scmp.lt.s32.totalorder %s237, 31
          %s241 = scalar_select %p240, %s237, 31
          %s242 = smul.addr %s239, 32
          %s243 = sadd.s32 %s241, %s242
          %s244 = smul.addr %s243, 8
          %s245 = scalar_lea.vmem %s2, %s244
          %s246 = smul.u32 16, %s23
        $region28: #{dbrx_moe_forward.1} parent=15 // pred_fallthru
          _
        // Predicated region
        $region29: #{dbrx_moe_forward.1} parent=15 // pred_check
          %p247 = pneg %p137
        $region30: #{dbrx_moe_forward.1} parent=15 // pred_check_branch
          %249 = sbr.rel (%p247) target = $region32
        $region31: #{dbrx_moe_forward.1} parent=15 // pred_region
          %s250 = sand.u32 %s127, 1
          %s251 = sand.u32 %s127, 1
          %s252 = smul.addr %s251, 128
          %s253 = scalar_lea.vmem [#allocation4], %s252
          %s254 = smul.addr %s22, 32
          %s255 = sadd.s32 %s23, %s254
          %s256 = smul.addr %s255, 8
          %s257 = scalar_lea.vmem %s3, %s256
          // Predicated region
          $region33: #{dbrx_moe_forward.1} parent=31 // pred_check
            _
          $region34: #{dbrx_moe_forward.1} parent=31 // pred_check_branch
            %259 = sbr.rel (0) target = $region36
          $region35: #{dbrx_moe_forward.1} parent=31 // pred_region
            // Predicated region
            $region37: #{dbrx_moe_forward.1} parent=35 // pred_check
              _
            $region38: #{dbrx_moe_forward.1} parent=35 // pred_check_branch
              %261 = sbr.rel (0) target = $region40
            $region39: #{dbrx_moe_forward.1} parent=35 // pred_region
              // Predicated region
              $region52: #{dbrx_moe_forward.1} parent=39 // pred_check
                _
              $region53: #{dbrx_moe_forward.1} parent=39 // pred_check_branch
                %306 = sbr.rel (0) target = $region55
              $region54: #{dbrx_moe_forward.1} parent=39 // pred_region
                loop: start=0, step=1, limit=1
                $region56: #{dbrx_moe_forward.1} parent=54 // loop_pre_header
                  _
                $region57: #{dbrx_moe_forward.1} parent=54 // loop_header
                  %s308 = sphi 0, %s312
                  %p309 = scmp.ge.s32.totalorder %s308, 1
                  %s313 = sphi %s257, %s257
                  %s314 = sphi %s253, %s253
                $region58: #{dbrx_moe_forward.1} parent=54 // loop_header_branch
                  %311 = sbr.rel (%p309) target = $region62
                $region59: #{dbrx_moe_forward.1} parent=54 // loop_body
                  %v315 = vld [vmem:[%s313] sm:$0xff]
                  %316 = vst [vmem:[%s314] sm:$0xff] %v315
                  %v317 = vld [vmem:[%s313 + $0x10] sm:$0xff]
                  %318 = vst [vmem:[%s314 + $0x8] sm:$0xff] %v317
                  %v319 = vld [vmem:[%s313 + $0x20] sm:$0xff]
                  %320 = vst [vmem:[%s314 + $0x10] sm:$0xff] %v319
                  %v321 = vld [vmem:[%s313 + $0x30] sm:$0xff]
                  %322 = vst [vmem:[%s314 + $0x18] sm:$0xff] %v321
                  %v323 = vld [vmem:[%s313 + $0x40] sm:$0xff]
                  %324 = vst [vmem:[%s314 + $0x20] sm:$0xff] %v323
                  %v325 = vld [vmem:[%s313 + $0x50] sm:$0xff]
                  %326 = vst [vmem:[%s314 + $0x28] sm:$0xff] %v325
                  %v327 = vld [vmem:[%s313 + $0x60] sm:$0xff]
                  %328 = vst [vmem:[%s314 + $0x30] sm:$0xff] %v327
                  %v329 = vld [vmem:[%s313 + $0x70] sm:$0xff]
                  %330 = vst [vmem:[%s314 + $0x38] sm:$0xff] %v329
                  %v331 = vld [vmem:[%s313 + $0x80] sm:$0xff]
                  %332 = vst [vmem:[%s314 + $0x40] sm:$0xff] %v331
                  %v333 = vld [vmem:[%s313 + $0x90] sm:$0xff]
                  %334 = vst [vmem:[%s314 + $0x48] sm:$0xff] %v333
                  %v335 = vld [vmem:[%s313 + $0xa0] sm:$0xff]
                  %336 = vst [vmem:[%s314 + $0x50] sm:$0xff] %v335
                  %v337 = vld [vmem:[%s313 + $0xb0] sm:$0xff]
                  %338 = vst [vmem:[%s314 + $0x58] sm:$0xff] %v337
                  %v339 = vld [vmem:[%s313 + $0xc0] sm:$0xff]
                  %340 = vst [vmem:[%s314 + $0x60] sm:$0xff] %v339
                  %v341 = vld [vmem:[%s313 + $0xd0] sm:$0xff]
                  %342 = vst [vmem:[%s314 + $0x68] sm:$0xff] %v341
                  %v343 = vld [vmem:[%s313 + $0xe0] sm:$0xff]
                  %344 = vst [vmem:[%s314 + $0x70] sm:$0xff] %v343
                  %v345 = vld [vmem:[%s313 + $0xf0] sm:$0xff]
                  %346 = vst [vmem:[%s314 + $0x78] sm:$0xff] %v345
                $region60: #{dbrx_moe_forward.1} parent=54 // loop_footer
                  %s312 = sadd.s32 1, %s308
                $region61: #{dbrx_moe_forward.1} parent=54 // loop_footer_branch
                  %307 = sbr.rel target = $region57
                $region62: #{dbrx_moe_forward.1} parent=54 // loop_exit
                  _
              $region55: #{dbrx_moe_forward.1} parent=39 // pred_fallthru
                _
              // Predicated region
              $region63: #{dbrx_moe_forward.1} parent=39 // pred_check
                _
              $region64: #{dbrx_moe_forward.1} parent=39 // pred_check_branch
                %348 = sbr.rel target = $region66
              $region65: #{dbrx_moe_forward.1} parent=39 // pred_region
                _
              $region66: #{dbrx_moe_forward.1} parent=39 // pred_fallthru
                _
            $region40: #{dbrx_moe_forward.1} parent=35 // pred_fallthru
              _
            // Predicated region
            $region41: #{dbrx_moe_forward.1} parent=35 // pred_check
              _
            $region42: #{dbrx_moe_forward.1} parent=35 // pred_check_branch
              %263 = sbr.rel target = $region44
            $region43: #{dbrx_moe_forward.1} parent=35 // pred_region
              loop: start=0, step=1, limit=1
              $region45: #{dbrx_moe_forward.1} parent=43 // loop_pre_header
                _
              $region46: #{dbrx_moe_forward.1} parent=43 // loop_header
                %s266 = sphi 0, %s270
                %p267 = scmp.ge.s32.totalorder %s266, 1
                %s271 = sphi %s257, %s257
                %s272 = sphi %s253, %s253
              $region47: #{dbrx_moe_forward.1} parent=43 // loop_header_branch
                %269 = sbr.rel (%p267) target = $region51
              $region48: #{dbrx_moe_forward.1} parent=43 // loop_body
                %v273 = vld [vmem:[%s271] sm:$0xff]
                %274 = vst [vmem:[%s272] sm:$0xff] %v273
                %v275 = vld [vmem:[%s271 + $0x10] sm:$0xff]
                %276 = vst [vmem:[%s272 + $0x8] sm:$0xff] %v275
                %v277 = vld [vmem:[%s271 + $0x20] sm:$0xff]
                %278 = vst [vmem:[%s272 + $0x10] sm:$0xff] %v277
                %v279 = vld [vmem:[%s271 + $0x30] sm:$0xff]
                %280 = vst [vmem:[%s272 + $0x18] sm:$0xff] %v279
                %v281 = vld [vmem:[%s271 + $0x40] sm:$0xff]
                %282 = vst [vmem:[%s272 + $0x20] sm:$0xff] %v281
                %v283 = vld [vmem:[%s271 + $0x50] sm:$0xff]
                %284 = vst [vmem:[%s272 + $0x28] sm:$0xff] %v283
                %v285 = vld [vmem:[%s271 + $0x60] sm:$0xff]
                %286 = vst [vmem:[%s272 + $0x30] sm:$0xff] %v285
                %v287 = vld [vmem:[%s271 + $0x70] sm:$0xff]
                %288 = vst [vmem:[%s272 + $0x38] sm:$0xff] %v287
                %v289 = vld [vmem:[%s271 + $0x80] sm:$0xff]
                %290 = vst [vmem:[%s272 + $0x40] sm:$0xff] %v289
                %v291 = vld [vmem:[%s271 + $0x90] sm:$0xff]
                %292 = vst [vmem:[%s272 + $0x48] sm:$0xff] %v291
                %v293 = vld [vmem:[%s271 + $0xa0] sm:$0xff]
                %294 = vst [vmem:[%s272 + $0x50] sm:$0xff] %v293
                %v295 = vld [vmem:[%s271 + $0xb0] sm:$0xff]
                %296 = vst [vmem:[%s272 + $0x58] sm:$0xff] %v295
                %v297 = vld [vmem:[%s271 + $0xc0] sm:$0xff]
                %298 = vst [vmem:[%s272 + $0x60] sm:$0xff] %v297
                %v299 = vld [vmem:[%s271 + $0xd0] sm:$0xff]
                %300 = vst [vmem:[%s272 + $0x68] sm:$0xff] %v299
                %v301 = vld [vmem:[%s271 + $0xe0] sm:$0xff]
                %302 = vst [vmem:[%s272 + $0x70] sm:$0xff] %v301
                %v303 = vld [vmem:[%s271 + $0xf0] sm:$0xff]
                %304 = vst [vmem:[%s272 + $0x78] sm:$0xff] %v303
              $region49: #{dbrx_moe_forward.1} parent=43 // loop_footer
                %s270 = sadd.s32 1, %s266
              $region50: #{dbrx_moe_forward.1} parent=43 // loop_footer_branch
                %265 = sbr.rel target = $region46
              $region51: #{dbrx_moe_forward.1} parent=43 // loop_exit
                _
            $region44: #{dbrx_moe_forward.1} parent=35 // pred_fallthru
              _
          $region36: #{dbrx_moe_forward.1} parent=31 // pred_fallthru
            _
          %349 = vnop
        $region32: #{dbrx_moe_forward.1} parent=15 // pred_fallthru
          _
        // Predicated region
        $region67: #{dbrx_moe_forward.1} parent=15 // pred_check
          %p350 = pneg %p163
        $region68: #{dbrx_moe_forward.1} parent=15 // pred_check_branch
          %352 = sbr.rel (%p350) target = $region70
        $region69: #{dbrx_moe_forward.1} parent=15 // pred_region
          %p353 = scmp.lt.s32.totalorder %s21, 1
          %s354 = scalar_select %p353, %s21, 1
          %s355 = smul.addr %s354, 8
          %s356 = scalar_lea.vmem %s4, %s355
        $region70: #{dbrx_moe_forward.1} parent=15 // pred_fallthru
          _
      $region16: #{dbrx_moe_forward.1} parent=5 // pred_fallthru
        _
      %p357 = scmp.le.s32.totalorder 1, %s14
      %p358 = scmp.lt.s32.totalorder %s14, 33
      %p359 = pnand %p357, %p358
      %p360 = pneg %p359
      // Predicated region
      $region71: #{dbrx_moe_forward.1} parent=5 // pred_check
        _
      $region72: #{dbrx_moe_forward.1} parent=5 // pred_check_branch
        %362 = sbr.rel (%p359) target = $region74
      $region73: #{dbrx_moe_forward.1} parent=5 // pred_region
        %s363 = ssub.s32 %s14, 1
        %s364 = sand.u32 %s130, 1
        %s365 = sand.u32 %s130, 1
        %s366 = smul.addr %s365, 128
        %s367 = scalar_lea.vmem [#allocation4], %s366
        // Predicated region
        $region75: #{dbrx_moe_forward.1} parent=73 // pred_check
          %p368 = pneg %p143
        $region76: #{dbrx_moe_forward.1} parent=73 // pred_check_branch
          %370 = sbr.rel (%p368) target = $region78
        $region77: #{dbrx_moe_forward.1} parent=73 // pred_region
          _
        $region78: #{dbrx_moe_forward.1} parent=73 // pred_fallthru
          _
        %p371 = scmp.lt.s32.totalorder %s24, 1
        %s372 = scalar_select %p371, %s24, 1
        %s373 = smul.addr %s372, 8
        %s374 = scalar_lea.vmem %s0, %s373
        %p375 = pneg %p59
        %p376 = pneg %p56
        %s377 = smul.u32 16, %s26
        %p378 = scmp.lt.s32.totalorder %s25, 7
        %s379 = scalar_select %p378, %s25, 7
        %p380 = scmp.lt.s32.totalorder %s377, 31
        %s381 = scalar_select %p380, %s377, 31
        %s382 = smul.addr %s379, 32
        %s383 = sadd.s32 %s381, %s382
        %s384 = smul.addr %s383, 8
        %s385 = scalar_lea.vmem %s1, %s384
        %p386 = pneg %p87
        %p387 = pneg %p84
        %s388 = smul.u32 16, %s26
        %p389 = scmp.lt.s32.totalorder %s25, 7
        %s390 = scalar_select %p389, %s25, 7
        %p391 = scmp.lt.s32.totalorder %s388, 31
        %s392 = scalar_select %p391, %s388, 31
        %s393 = smul.addr %s390, 32
        %s394 = sadd.s32 %s392, %s393
        %s395 = smul.addr %s394, 8
        %s396 = scalar_lea.vmem %s2, %s395
        %p397 = pneg %p115
        %p398 = pneg %p112
        %s399 = sand.u32 %s130, 1
        %s400 = sand.u32 %s130, 1
        %s401 = smul.addr %s400, 128
        %s402 = scalar_lea.vmem [#allocation4], %s401
        %p403 = pneg %p143
        %p404 = pneg %p140
        %p405 = scmp.lt.s32.totalorder %s24, 1
        %s406 = scalar_select %p405, %s24, 1
        %s407 = smul.addr %s406, 8
        %s408 = scalar_lea.vmem %s4, %s407
        %p409 = pneg %p169
        %p410 = pneg %p166
        %p411 = pneg %p195
        %p412 = pneg %p192
        %s413 = sand.u32 %s182, 1
        %s414 = scalar_lea.sflag [#allocation6], %s413
        %s415 = sand.u32 %s182, 1
        %s416 = smul.addr %s415, 8
        %s417 = scalar_lea.vmem [#allocation5], %s416
        %p418 = scmp.lt.s32.totalorder %s24, 1
        %s419 = scalar_select %p418, %s24, 1
        %s420 = smul.addr %s419, 8
        %s421 = scalar_lea.vmem %s0, %s420
        %s422 = smul.u32 16, %s26
        %p423 = scmp.lt.s32.totalorder %s25, 7
        %s424 = scalar_select %p423, %s25, 7
        %p425 = scmp.lt.s32.totalorder %s422, 31
        %s426 = scalar_select %p425, %s422, 31
        %s427 = smul.addr %s424, 32
        %s428 = sadd.s32 %s426, %s427
        %s429 = smul.addr %s428, 8
        %s430 = scalar_lea.vmem %s1, %s429
        %s431 = smul.u32 16, %s26
        %s432 = smul.u32 16, %s26
        %p433 = scmp.lt.s32.totalorder %s25, 7
        %s434 = scalar_select %p433, %s25, 7
        %p435 = scmp.lt.s32.totalorder %s432, 31
        %s436 = scalar_select %p435, %s432, 31
        %s437 = smul.addr %s434, 32
        %s438 = sadd.s32 %s436, %s437
        %s439 = smul.addr %s438, 8
        %s440 = scalar_lea.vmem %s2, %s439
        %s441 = smul.u32 16, %s26
        %p442 = scmp.lt.s32.totalorder %s24, 1
        %s443 = scalar_select %p442, %s24, 1
        %s444 = smul.addr %s443, 8
        %s445 = scalar_lea.vmem %s4, %s444
        %p446 = scmp.eq.s32.totalorder %s25, 0
        %p447 = scmp.eq.s32.totalorder %s26, 0
        %p448 = pnand %p446, %p447
        %p449 = pneg %p448
        // Predicated region
        $region79: #{dbrx_moe_forward.1} parent=73 // pred_check
          _
        $region80: #{dbrx_moe_forward.1} parent=73 // pred_check_branch
          %451 = sbr.rel (%p448) target = $region82
        $region81: #{dbrx_moe_forward.1} parent=73 // pred_region
          %452 = vst [vmem:[#allocation3] sm:$0xff] 0.0
        $region82: #{dbrx_moe_forward.1} parent=73 // pred_fallthru
          _
        // Predicated region
        $region83: #{dbrx_moe_forward.1} parent=73 // pred_check
          %p453 = pneg %p447
        $region84: #{dbrx_moe_forward.1} parent=73 // pred_check_branch
          %455 = sbr.rel (%p453) target = $region86
        $region85: #{dbrx_moe_forward.1} parent=73 // pred_region
          %456 = vst [vmem:[#allocation2] sm:$0xff] 0.0
        $region86: #{dbrx_moe_forward.1} parent=73 // pred_fallthru
          _
        %v457 = vld [vmem:[%s421] sm:$0xff]
        %v458 = vld [vmem:[%s430] sm:$0xff]
        %v459 = vld [vmem:[%s430 + $0x8] sm:$0xff]
        %v460 = vld [vmem:[%s430 + $0x10] sm:$0xff]
        %v461 = vld [vmem:[%s430 + $0x18] sm:$0xff]
        %v462 = vld [vmem:[%s430 + $0x20] sm:$0xff]
        %v463 = vld [vmem:[%s430 + $0x28] sm:$0xff]
        %v464 = vld [vmem:[%s430 + $0x30] sm:$0xff]
        %v465 = vld [vmem:[%s430 + $0x38] sm:$0xff]
        %v466 = vld [vmem:[%s430 + $0x40] sm:$0xff]
        %v467 = vld [vmem:[%s430 + $0x48] sm:$0xff]
        %v468 = vld [vmem:[%s430 + $0x50] sm:$0xff]
        %v469 = vld [vmem:[%s430 + $0x58] sm:$0xff]
        %v470 = vld [vmem:[%s430 + $0x60] sm:$0xff]
        %v471 = vld [vmem:[%s430 + $0x68] sm:$0xff]
        %v472 = vld [vmem:[%s430 + $0x70] sm:$0xff]
        %v473 = vld [vmem:[%s430 + $0x78] sm:$0xff]
        %474 = vmatprep.subr.mxu0 0.0
        %475 = vmatpush1.xpose.msra.mxu0 %v458
        %476 = vmatprep.subr.mxu0 0.0
        %477 = vmatpush1.xpose.msra.mxu0 %v459
        %478 = vmatprep.subr.mxu0 0.0
        %479 = vmatpush1.xpose.msra.mxu0 %v460
        %480 = vmatprep.subr.mxu0 0.0
        %481 = vmatpush1.xpose.msra.mxu0 %v461
        %482 = vmatprep.subr.mxu0 0.0
        %483 = vmatpush1.xpose.msra.mxu0 %v462
        %484 = vmatprep.subr.mxu0 0.0
        %485 = vmatpush1.xpose.msra.mxu0 %v463
        %486 = vmatprep.subr.mxu0 0.0
        %487 = vmatpush1.xpose.msra.mxu0 %v464
        %488 = vmatprep.subr.mxu0 0.0
        %489 = vmatpush1.xpose.msra.mxu0 %v465
        %490 = vmatprep.subr.mxu0 0.0
        %491 = vmatpush1.xpose.msra.mxu0 %v466
        %492 = vmatprep.subr.mxu0 0.0
        %493 = vmatpush1.xpose.msra.mxu0 %v467
        %494 = vmatprep.subr.mxu0 0.0
        %495 = vmatpush1.xpose.msra.mxu0 %v468
        %496 = vmatprep.subr.mxu0 0.0
        %497 = vmatpush1.xpose.msra.mxu0 %v469
        %498 = vmatprep.subr.mxu0 0.0
        %499 = vmatpush1.xpose.msra.mxu0 %v470
        %500 = vmatprep.subr.mxu0 0.0
        %501 = vmatpush1.xpose.msra.mxu0 %v471
        %502 = vmatprep.subr.mxu0 0.0
        %503 = vmatpush1.xpose.msra.mxu0 %v472
        %504 = vmatprep.subr.mxu0 0.0
        %505 = vmatpush1.xpose.msra.mxu0 %v473
        %506 = vmatprep.subr.mxu0 0.0
        %507 = vmatpush1.xpose.msra.mxu0 0.0
        %508 = vmatprep.subr.mxu0 0.0
        %509 = vmatpush1.xpose.msra.mxu0 0.0
        %510 = vmatprep.subr.mxu0 0.0
        %511 = vmatpush1.xpose.msra.mxu0 0.0
        %512 = vmatprep.subr.mxu0 0.0
        %513 = vmatpush1.xpose.msra.mxu0 0.0
        %514 = vmatprep.subr.mxu0 0.0
        %515 = vmatpush1.xpose.msra.mxu0 0.0
        %516 = vmatprep.subr.mxu0 0.0
        %517 = vmatpush1.xpose.msra.mxu0 0.0
        %518 = vmatprep.subr.mxu0 0.0
        %519 = vmatpush1.xpose.msra.mxu0 0.0
        %520 = vmatprep.subr.mxu0 0.0
        %521 = vmatpush1.xpose.msra.mxu0 0.0
        %522 = vmatprep.subr.mxu0 0.0
        %523 = vmatpush1.xpose.msra.mxu0 0.0
        %524 = vmatprep.subr.mxu0 0.0
        %525 = vmatpush1.xpose.msra.mxu0 0.0
        %526 = vmatprep.subr.mxu0 0.0
        %527 = vmatpush1.xpose.msra.mxu0 0.0
        %528 = vmatprep.subr.mxu0 0.0
        %529 = vmatpush1.xpose.msra.mxu0 0.0
        %530 = vmatprep.subr.mxu0 0.0
        %531 = vmatpush1.xpose.msra.mxu0 0.0
        %532 = vmatprep.subr.mxu0 0.0
        %533 = vmatpush1.xpose.msra.mxu0 0.0
        %534 = vmatprep.subr.mxu0 0.0
        %535 = vmatpush1.xpose.msra.mxu0 0.0
        %536 = vmatprep.subr.mxu0 0.0
        %537 = vmatpush1.xpose.msra.mxu0 0.0
        %538 = vmatprep.mubr.f32.mxu0 0.0
        %539 = vmatmul.mubr.f32.gmra.mrb[0].mxu0 %v457
        %v540 = vpop.f32.mrb[0].mxu0
        %v541 = vadd.f32 0.0, %v540
        %v542 = vpop.f32.mrb[0].mxu0
        %543 = vdwg.mxu0
        %v544 = vld [vmem:[%s440] sm:$0xff]
        %v545 = vld [vmem:[%s440 + $0x8] sm:$0xff]
        %v546 = vld [vmem:[%s440 + $0x10] sm:$0xff]
        %v547 = vld [vmem:[%s440 + $0x18] sm:$0xff]
        %v548 = vld [vmem:[%s440 + $0x20] sm:$0xff]
        %v549 = vld [vmem:[%s440 + $0x28] sm:$0xff]
        %v550 = vld [vmem:[%s440 + $0x30] sm:$0xff]
        %v551 = vld [vmem:[%s440 + $0x38] sm:$0xff]
        %v552 = vld [vmem:[%s440 + $0x40] sm:$0xff]
        %v553 = vld [vmem:[%s440 + $0x48] sm:$0xff]
        %v554 = vld [vmem:[%s440 + $0x50] sm:$0xff]
        %v555 = vld [vmem:[%s440 + $0x58] sm:$0xff]
        %v556 = vld [vmem:[%s440 + $0x60] sm:$0xff]
        %v557 = vld [vmem:[%s440 + $0x68] sm:$0xff]
        %v558 = vld [vmem:[%s440 + $0x70] sm:$0xff]
        %v559 = vld [vmem:[%s440 + $0x78] sm:$0xff]
        %560 = vmatprep.subr.mxu0 0.0
        %561 = vmatpush1.xpose.msra.mxu0 %v544
        %562 = vmatprep.subr.mxu0 0.0
        %563 = vmatpush1.xpose.msra.mxu0 %v545
        %564 = vmatprep.subr.mxu0 0.0
        %565 = vmatpush1.xpose.msra.mxu0 %v546
        %566 = vmatprep.subr.mxu0 0.0
        %567 = vmatpush1.xpose.msra.mxu0 %v547
        %568 = vmatprep.subr.mxu0 0.0
        %569 = vmatpush1.xpose.msra.mxu0 %v548
        %570 = vmatprep.subr.mxu0 0.0
        %571 = vmatpush1.xpose.msra.mxu0 %v549
        %572 = vmatprep.subr.mxu0 0.0
        %573 = vmatpush1.xpose.msra.mxu0 %v550
        %574 = vmatprep.subr.mxu0 0.0
        %575 = vmatpush1.xpose.msra.mxu0 %v551
        %576 = vmatprep.subr.mxu0 0.0
        %577 = vmatpush1.xpose.msra.mxu0 %v552
        %578 = vmatprep.subr.mxu0 0.0
        %579 = vmatpush1.xpose.msra.mxu0 %v553
        %580 = vmatprep.subr.mxu0 0.0
        %581 = vmatpush1.xpose.msra.mxu0 %v554
        %582 = vmatprep.subr.mxu0 0.0
        %583 = vmatpush1.xpose.msra.mxu0 %v555
        %584 = vmatprep.subr.mxu0 0.0
        %585 = vmatpush1.xpose.msra.mxu0 %v556
        %586 = vmatprep.subr.mxu0 0.0
        %587 = vmatpush1.xpose.msra.mxu0 %v557
        %588 = vmatprep.subr.mxu0 0.0
        %589 = vmatpush1.xpose.msra.mxu0 %v558
        %590 = vmatprep.subr.mxu0 0.0
        %591 = vmatpush1.xpose.msra.mxu0 %v559
        %592 = vmatprep.subr.mxu0 0.0
        %593 = vmatpush1.xpose.msra.mxu0 0.0
        %594 = vmatprep.subr.mxu0 0.0
        %595 = vmatpush1.xpose.msra.mxu0 0.0
        %596 = vmatprep.subr.mxu0 0.0
        %597 = vmatpush1.xpose.msra.mxu0 0.0
        %598 = vmatprep.subr.mxu0 0.0
        %599 = vmatpush1.xpose.msra.mxu0 0.0
        %600 = vmatprep.subr.mxu0 0.0
        %601 = vmatpush1.xpose.msra.mxu0 0.0
        %602 = vmatprep.subr.mxu0 0.0
        %603 = vmatpush1.xpose.msra.mxu0 0.0
        %604 = vmatprep.subr.mxu0 0.0
        %605 = vmatpush1.xpose.msra.mxu0 0.0
        %606 = vmatprep.subr.mxu0 0.0
        %607 = vmatpush1.xpose.msra.mxu0 0.0
        %608 = vmatprep.subr.mxu0 0.0
        %609 = vmatpush1.xpose.msra.mxu0 0.0
        %610 = vmatprep.subr.mxu0 0.0
        %611 = vmatpush1.xpose.msra.mxu0 0.0
        %612 = vmatprep.subr.mxu0 0.0
        %613 = vmatpush1.xpose.msra.mxu0 0.0
        %614 = vmatprep.subr.mxu0 0.0
        %615 = vmatpush1.xpose.msra.mxu0 0.0
        %616 = vmatprep.subr.mxu0 0.0
        %617 = vmatpush1.xpose.msra.mxu0 0.0
        %618 = vmatprep.subr.mxu0 0.0
        %619 = vmatpush1.xpose.msra.mxu0 0.0
        %620 = vmatprep.subr.mxu0 0.0
        %621 = vmatpush1.xpose.msra.mxu0 0.0
        %622 = vmatprep.subr.mxu0 0.0
        %623 = vmatpush1.xpose.msra.mxu0 0.0
        %624 = vmatprep.mubr.f32.mxu0 0.0
        %625 = vmatmul.mubr.f32.gmra.mrb[0].mxu0 %v457
        %v626 = vpop.f32.mrb[0].mxu0
        %v627 = vadd.f32 0.0, %v626
        %v628 = vpop.f32.mrb[0].mxu0
        %629 = vdwg.mxu0
        %v630 = vxor.u32 %v541, 2147483648
        %v631 = vmul.f32 %v630, 1.442695
        %v632 = vpow.pop %v631
        %v633 = vadd.f32 %v632, 1.0
        %v634 = vrcp.pop %v633
        %v635 = vmul.f32 1.0, %v634
        %v636 = vmul.f32 %v541, %v635
        %v637 = vmul.f32 %v636, %v627
        %v638 = vld [vmem:[#allocation2] sm:$0xff]
        %v639 = vld [vmem:[%s367] sm:$0xff]
        %v640 = vld [vmem:[%s367 + $0x8] sm:$0xff]
        %v641 = vld [vmem:[%s367 + $0x10] sm:$0xff]
        %v642 = vld [vmem:[%s367 + $0x18] sm:$0xff]
        %v643 = vld [vmem:[%s367 + $0x20] sm:$0xff]
        %v644 = vld [vmem:[%s367 + $0x28] sm:$0xff]
        %v645 = vld [vmem:[%s367 + $0x30] sm:$0xff]
        %v646 = vld [vmem:[%s367 + $0x38] sm:$0xff]
        %v647 = vld [vmem:[%s367 + $0x40] sm:$0xff]
        %v648 = vld [vmem:[%s367 + $0x48] sm:$0xff]
        %v649 = vld [vmem:[%s367 + $0x50] sm:$0xff]
        %v650 = vld [vmem:[%s367 + $0x58] sm:$0xff]
        %v651 = vld [vmem:[%s367 + $0x60] sm:$0xff]
        %v652 = vld [vmem:[%s367 + $0x68] sm:$0xff]
        %v653 = vld [vmem:[%s367 + $0x70] sm:$0xff]
        %v654 = vld [vmem:[%s367 + $0x78] sm:$0xff]
        %655 = vmatprep.subr.mxu0 0.0
        %656 = vmatpush1.xpose.msra.mxu0 %v639
        %657 = vmatprep.subr.mxu0 0.0
        %658 = vmatpush1.xpose.msra.mxu0 %v640
        %659 = vmatprep.subr.mxu0 0.0
        %660 = vmatpush1.xpose.msra.mxu0 %v641
        %661 = vmatprep.subr.mxu0 0.0
        %662 = vmatpush1.xpose.msra.mxu0 %v642
        %663 = vmatprep.subr.mxu0 0.0
        %664 = vmatpush1.xpose.msra.mxu0 %v643
        %665 = vmatprep.subr.mxu0 0.0
        %666 = vmatpush1.xpose.msra.mxu0 %v644
        %667 = vmatprep.subr.mxu0 0.0
        %668 = vmatpush1.xpose.msra.mxu0 %v645
        %669 = vmatprep.subr.mxu0 0.0
        %670 = vmatpush1.xpose.msra.mxu0 %v646
        %671 = vmatprep.subr.mxu0 0.0
        %672 = vmatpush1.xpose.msra.mxu0 %v647
        %673 = vmatprep.subr.mxu0 0.0
        %674 = vmatpush1.xpose.msra.mxu0 %v648
        %675 = vmatprep.subr.mxu0 0.0
        %676 = vmatpush1.xpose.msra.mxu0 %v649
        %677 = vmatprep.subr.mxu0 0.0
        %678 = vmatpush1.xpose.msra.mxu0 %v650
        %679 = vmatprep.subr.mxu0 0.0
        %680 = vmatpush1.xpose.msra.mxu0 %v651
        %681 = vmatprep.subr.mxu0 0.0
        %682 = vmatpush1.xpose.msra.mxu0 %v652
        %683 = vmatprep.subr.mxu0 0.0
        %684 = vmatpush1.xpose.msra.mxu0 %v653
        %685 = vmatprep.subr.mxu0 0.0
        %686 = vmatpush1.xpose.msra.mxu0 %v654
        %687 = vmatprep.subr.mxu0 0.0
        %688 = vmatpush1.xpose.msra.mxu0 0.0
        %689 = vmatprep.subr.mxu0 0.0
        %690 = vmatpush1.xpose.msra.mxu0 0.0
        %691 = vmatprep.subr.mxu0 0.0
        %692 = vmatpush1.xpose.msra.mxu0 0.0
        %693 = vmatprep.subr.mxu0 0.0
        %694 = vmatpush1.xpose.msra.mxu0 0.0
        %695 = vmatprep.subr.mxu0 0.0
        %696 = vmatpush1.xpose.msra.mxu0 0.0
        %697 = vmatprep.subr.mxu0 0.0
        %698 = vmatpush1.xpose.msra.mxu0 0.0
        %699 = vmatprep.subr.mxu0 0.0
        %700 = vmatpush1.xpose.msra.mxu0 0.0
        %701 = vmatprep.subr.mxu0 0.0
        %702 = vmatpush1.xpose.msra.mxu0 0.0
        %703 = vmatprep.subr.mxu0 0.0
        %704 = vmatpush1.xpose.msra.mxu0 0.0
        %705 = vmatprep.subr.mxu0 0.0
        %706 = vmatpush1.xpose.msra.mxu0 0.0
        %707 = vmatprep.subr.mxu0 0.0
        %708 = vmatpush1.xpose.msra.mxu0 0.0
        %709 = vmatprep.subr.mxu0 0.0
        %710 = vmatpush1.xpose.msra.mxu0 0.0
        %711 = vmatprep.subr.mxu0 0.0
        %712 = vmatpush1.xpose.msra.mxu0 0.0
        %713 = vmatprep.subr.mxu0 0.0
        %714 = vmatpush1.xpose.msra.mxu0 0.0
        %715 = vmatprep.subr.mxu0 0.0
        %716 = vmatpush1.xpose.msra.mxu0 0.0
        %717 = vmatprep.subr.mxu0 0.0
        %718 = vmatpush1.xpose.msra.mxu0 0.0
        %719 = vmatprep.mubr.f32.mxu0 0.0
        %720 = vmatmul.mubr.f32.gmra.mrb[0].mxu0 %v637
        %v721 = vpop.f32.mrb[0].mxu0
        %v722 = vadd.f32 0.0, %v721
        %v723 = vpop.f32.mrb[0].mxu0
        %724 = vdwg.mxu0
        %v725 = vadd.f32 %v638, %v722
        %726 = vst [vmem:[#allocation2] sm:$0xff] %v725
        %p727 = scmp.eq.s32.totalorder %s26, 1
        // Predicated region
        $region87: #{dbrx_moe_forward.1} parent=73 // pred_check
          %p728 = pneg %p727
        $region88: #{dbrx_moe_forward.1} parent=73 // pred_check_branch
          %730 = sbr.rel (%p728) target = $region90
        $region89: #{dbrx_moe_forward.1} parent=73 // pred_region
          %v731 = vld [vmem:[%s445] sm:$0xff]
          %v732 = vlaneseq
          %v733 = vand.u32 %v732, 127
          %v734 = vstv %s25
          %vm735 = vcmp.eq.s32.totalorder %v733, %v734
          %v736 = vsel %vm735, %v731, 0.0
          %vm737 = vcmask 64512
          %v738 = vsel %vm737, %v736, 0.0
          %739 = vadd.xlane.f32.xlu0 %v738
          %v740 = vpop.xlane.xlu0 %739
          %v741 = vld [vmem:[#allocation3] sm:$0xff]
          %v742 = vld [vmem:[#allocation2] sm:$0xff]
          %v743 = vmul.f32 %v742, %v740
          %v744 = vadd.f32 %v741, %v743
          %745 = vst [vmem:[#allocation3] sm:$0xff] %v744
          %p746 = scmp.eq.s32.totalorder %s25, 7
          // Predicated region
          $region91: #{dbrx_moe_forward.1} parent=89 // pred_check
            %p747 = pneg %p746
          $region92: #{dbrx_moe_forward.1} parent=89 // pred_check_branch
            %749 = sbr.rel (%p747) target = $region94
          $region93: #{dbrx_moe_forward.1} parent=89 // pred_region
            %v750 = vld [vmem:[#allocation3] sm:$0xff]
            %751 = vst [vmem:[%s417] sm:$0xff] %v750
          $region94: #{dbrx_moe_forward.1} parent=89 // pred_fallthru
            _
        $region90: #{dbrx_moe_forward.1} parent=73 // pred_fallthru
          _
        %s752 = sand.u32 %s182, 1
        %s753 = scalar_lea.sflag [#allocation6], %s752
        %s754 = sand.u32 %s182, 1
        %s755 = smul.addr %s754, 8
        %s756 = scalar_lea.vmem [#allocation5], %s755
        // Predicated region
        $region95: #{dbrx_moe_forward.1} parent=73 // pred_check
          %p757 = pneg %p192
        $region96: #{dbrx_moe_forward.1} parent=73 // pred_check_branch
          %759 = sbr.rel (%p757) target = $region98
        $region97: #{dbrx_moe_forward.1} parent=73 // pred_region
          %s761 = ssub.s32 128, 128
          %762 = vsyncadd %s753, %s761
          %s763 = smul.addr %s24, 128
          %s764 = scalar_lea.hbm %s5, %s763
          %s766 = sshll.u32 %s756, 4
          %s767 = int_to_ptr.vmem [resolvable:$true] %s766
          %769 = dma.vmem_to_hbm [thread:$0]  %s767, 128, %s764, %s753
        $region98: #{dbrx_moe_forward.1} parent=73 // pred_fallthru
          _
      $region74: #{dbrx_moe_forward.1} parent=5 // pred_fallthru
        _
      %p770 = scmp.le.s32.totalorder 2, %s14
      // Predicated region
      $region99: #{dbrx_moe_forward.1} parent=5 // pred_check
        %p771 = pneg %p770
      $region100: #{dbrx_moe_forward.1} parent=5 // pred_check_branch
        %773 = sbr.rel (%p771) target = $region102
      $region101: #{dbrx_moe_forward.1} parent=5 // pred_region
        %s774 = ssub.s32 %s14, 2
        // Predicated region
        $region103: #{dbrx_moe_forward.1} parent=101 // pred_check
          %p775 = pneg %p198
        $region104: #{dbrx_moe_forward.1} parent=101 // pred_check_branch
          %777 = sbr.rel (%p775) target = $region106
        $region105: #{dbrx_moe_forward.1} parent=101 // pred_region
          %s778 = sand.u32 %s183, 1
          %s779 = scalar_lea.sflag [#allocation6], %s778
          %s780 = sand.u32 %s183, 1
          %s781 = smul.addr %s780, 8
          %s782 = scalar_lea.vmem [#allocation5], %s781
          %783 = dma.done %s779, 128
        $region106: #{dbrx_moe_forward.1} parent=101 // pred_fallthru
          _
      $region102: #{dbrx_moe_forward.1} parent=5 // pred_fallthru
        _
    $region6: #{dbrx_moe_forward.1} parent=1 // loop_footer
      %s18 = sadd.s32 1, %s14
    $region7: #{dbrx_moe_forward.1} parent=1 // loop_footer_branch
      %13 = sbr.rel target = $region3
    $region8: #{dbrx_moe_forward.1} parent=1 // loop_exit
      _
    %784 = vsyncpa [#allocation6], 1
    %s785 = scalar_lea.sflag [#allocation6], 1
    %786 = vsyncpa %s785, 1

</llo_original>
